<compile_context>
chip_gen: v6e
topology: v6e:2x2x1
jax: 0.10.0
libtpu: 0.0.40
codegen_flags: <defaults>
</compile_context>

<pallas_src>
import jax
import jax.numpy as jnp
from jax.experimental import pallas as pl
from jax.experimental.pallas import tpu as pltpu

BN_EPS = 1e-5


def _round_up(n: int, m: int) -> int:
    return ((n + m - 1) // m) * m


def _pad2(a, rows, cols):
    return jnp.pad(a, ((0, rows - a.shape[0]), (0, cols - a.shape[1])))


def _vmem_budget_bytes() -> int:
    """Chip-aware scoped-VMEM budget (large tiles on v5e/v6e, safe on v7x)."""
    try:
        cap = int(pltpu.get_tpu_info().vmem_capacity_bytes)
    except Exception:
        cap = 64 * 1024 * 1024  # conservative (v7x per-TC) fallback
    budget = min(int(cap * 0.8), cap - 8 * 1024 * 1024)  # headroom for Mosaic scratch
    return max(budget, 32 * 1024 * 1024)


def _pick_block_h(Bp, Rp, Hp, Pp, out_itemsize, vmem_budget):
    """Largest H tile (multiple of 128, dividing Hp) whose working set fits VMEM."""
    for cand in (1024, 512, 256, 128):
        tH = cand
        if tH > Hp or Hp % tH != 0:
            continue
        need = (Bp * Rp * 2                    # staged x (single copy, bf16)
                + 2 * Rp * tH * 2              # w1 tile, double-buffered
                + 2 * 2 * 8 * tH * 4           # gamma/beta tiles (sublane-padded)
                + 2 * tH * Pp * 2              # w2 tile, double-buffered
                + 2 * 8 * Pp * 4               # b2
                + Bp * Pp * 4                  # f32 accumulator
                + 2 * Bp * Pp * out_itemsize   # output block
                + 4 * Bp * tH * 4)             # h / centered / h_act temporaries
        if need <= vmem_budget:
            return tH
    return 128


def _make_mlp_kernel(b_true: int, need_mask: bool):
    inv_b = 1.0 / float(b_true)

    def kernel(x_hbm, w1_ref, gamma_ref, beta_ref, w2_ref, b2_ref, o_ref,
               x_vmem, x_sem, acc_ref):
        k = pl.program_id(0)

        @pl.when(k == 0)
        def _prologue():
            # Stage x into VMEM exactly once (its block never changes across the
            # grid), and zero the f32 output accumulator.
            cp = pltpu.make_async_copy(x_hbm, x_vmem, x_sem)
            cp.start()
            cp.wait()
            acc_ref[...] = jnp.zeros_like(acc_ref)

        # ---- Linear 1 column tile: (Bp, Rp) @ (Rp, tH), bf16 MXU, f32 result ----
        # (No bias: a bias before training-mode BatchNorm is cancelled by the mean.)
        h = jnp.dot(x_vmem[...], w1_ref[...], preferred_element_type=jnp.float32)

        # ---- BatchNorm1d (training mode, biased variance), folded scale/shift ----
        # Padded x rows are zero (and b1 is dropped) so they add 0 to the sum; the
        # centered pass is masked so they add 0 to the variance. Divide by true B.
        mean = jnp.sum(h, axis=0, keepdims=True) * inv_b                     # (1, tH)
        centered = h - mean
        if need_mask:
            row_ok = jax.lax.broadcasted_iota(jnp.int32, (h.shape[0], 1), 0) < b_true
            centered = jnp.where(row_ok, centered, 0.0)
        var = jnp.sum(centered * centered, axis=0, keepdims=True) * inv_b    # two-pass
        scale = gamma_ref[...] * jax.lax.rsqrt(var + BN_EPS)
        shift = beta_ref[...] - mean * scale
        h_act = jnp.maximum(h * scale + shift, 0.0)                          # BN + ReLU

        # ---- Linear 2 partial product, accumulated over H tiles in f32 ----
        acc_ref[...] += jnp.dot(h_act.astype(jnp.bfloat16), w2_ref[...],
                                preferred_element_type=jnp.float32)

        # ---- Epilogue: bias + cast once, on the last H tile only ----
        @pl.when(k == pl.num_programs(0) - 1)
        def _epilogue():
            o_ref[...] = (acc_ref[...] + b2_ref[...]).astype(o_ref.dtype)

    return kernel


def prepare_params(w1, b1, gamma, beta, w2, b2):
    """Pad + cast MLP parameters ONCE (hoisted out of the per-forward path).

    b1 is dropped: a bias added before training-mode BatchNorm is exactly cancelled
    by the batch-mean subtraction.
    """
    del b1
    R, H = w1.shape
    assert w2.shape[0] == H
    P = w2.shape[1]
    Rp = _round_up(R, 128)
    Hp = _round_up(H, 128)
    Pp = _round_up(P, 128)
    return {
        "w1": _pad2(w1.astype(jnp.bfloat16), Rp, Hp),
        "gamma": _pad2(gamma.reshape(1, H).astype(jnp.float32), 1, Hp),
        "beta": _pad2(beta.reshape(1, H).astype(jnp.float32), 1, Hp),
        "w2": _pad2(w2.astype(jnp.bfloat16), Hp, Pp),
        "b2": _pad2(b2.reshape(1, P).astype(jnp.float32), 1, Pp),
        "dims": (R, H, P, Rp, Hp, Pp),
    }


def mlp_forward_prepared(x, params):
    """x: (B, R); params: output of prepare_params."""
    R, H, P, Rp, Hp, Pp = params["dims"]
    B = x.shape[0]
    assert x.shape[1] == R

    Bp = _round_up(B, 8)                      # sublane-align the batch for the MXU
    out_itemsize = jnp.dtype(x.dtype).itemsize

    vmem_budget = _vmem_budget_bytes()
    tH = _pick_block_h(Bp, Rp, Hp, Pp, out_itemsize, vmem_budget)
    n_h = Hp // tH

    # Only the activations are padded/cast per call (weights are pre-prepared).
    x_p = _pad2(x, Bp, Rp).astype(jnp.bfloat16)

    kernel = _make_mlp_kernel(b_true=B, need_mask=(Bp != B))

    # Accurate traffic: x / w1 / w2 each streamed exactly once.
    cost = pl.CostEstimate(
        flops=2 * Bp * Rp * Hp + 2 * Bp * Hp * Pp,
        transcendentals=Hp,  # one rsqrt per hidden feature
        bytes_accessed=int(x_p.size * 2
                           + params["w1"].size * 2 + params["w2"].size * 2
                           + params["gamma"].size * 4 + params["beta"].size * 4
                           + params["b2"].size * 4
                           + Bp * Pp * out_itemsize),
    )

    out_padded = pl.pallas_call(
        kernel,
        out_shape=jax.ShapeDtypeStruct((Bp, Pp), x.dtype),
        grid_spec=pltpu.PrefetchScalarGridSpec(
            num_scalar_prefetch=0,
            grid=(n_h,),  # single reduction axis over H tiles
            in_specs=[
                pl.BlockSpec(memory_space=pl.ANY),           # x: raw HBM, staged once
                pl.BlockSpec((Rp, tH), lambda k: (0, k)),    # w1 column tile
                pl.BlockSpec((1, tH), lambda k: (0, k)),     # gamma tile
                pl.BlockSpec((1, tH), lambda k: (0, k)),     # beta tile
                pl.BlockSpec((tH, Pp), lambda k: (k, 0)),    # w2 row tile (full P)
                pl.BlockSpec((1, Pp), lambda k: (0, 0)),     # b2 (constant block)
            ],
            out_specs=pl.BlockSpec((Bp, Pp), lambda k: (0, 0)),  # resident output
            scratch_shapes=[
                pltpu.VMEM((Bp, Rp), jnp.bfloat16),   # staged x
                pltpu.SemaphoreType.DMA,              # x staging DMA completion
                pltpu.VMEM((Bp, Pp), jnp.float32),    # f32 output accumulator
            ],
        ),
        compiler_params=pltpu.CompilerParams(
            dimension_semantics=("arbitrary",),
            vmem_limit_bytes=int(vmem_budget),
        ),
        cost_estimate=cost,
    )(x_p, params["w1"], params["gamma"], params["beta"], params["w2"], params["b2"])

    if Bp == B and Pp == P:
        return out_padded
    return out_padded[:B, :P]


def mlp_forward(x, w1, b1, gamma, beta, w2, b2):
    """One-shot convenience wrapper (prefer prepare_params + mlp_forward_prepared
    inside a training loop so the weight pad/cast is not re-done every step)."""
    return mlp_forward_prepared(x, prepare_params(w1, b1, gamma, beta, w2, b2))


def reference_forward(x, w1, b1, gamma, beta, w2, b2):
    """Pure-JAX mirror of the PyTorch module (training-mode BN), using the same
    bf16-matmul / f32-accumulate precision policy as the kernel (b1 included)."""
    h = jnp.dot(x.astype(jnp.bfloat16), w1.astype(jnp.bfloat16),
                preferred_element_type=jnp.float32) + b1
    mean = jnp.mean(h, axis=0, keepdims=True)
    var = jnp.mean((h - mean) ** 2, axis=0, keepdims=True)
    h = (h - mean) * jax.lax.rsqrt(var + BN_EPS) * gamma + beta
    h = jnp.maximum(h, 0.0)
    return jnp.dot(h.astype(jnp.bfloat16), w2.astype(jnp.bfloat16),
                   preferred_element_type=jnp.float32) + b2


if __name__ == "__main__":
    # Small, forward-consistent shapes.
    batch = 8
    representation_size = 32
    hidden_size = 64
    projection_size = 16

    key = jax.random.PRNGKey(0)
    kx, kw1, kb1, kg, kb, kw2, kb2 = jax.random.split(key, 7)

    x = jax.random.normal(kx, (batch, representation_size), dtype=jnp.float32)

    # PyTorch-style fan_in uniform bounds; non-trivial BN affine to exercise folding.
    lim1 = 1.0 / (representation_size ** 0.5)
    w1 = jax.random.uniform(kw1, (representation_size, hidden_size),
                            minval=-lim1, maxval=lim1, dtype=jnp.float32)
    b1 = jax.random.uniform(kb1, (hidden_size,),
                            minval=-lim1, maxval=lim1, dtype=jnp.float32)
    gamma = 1.0 + 0.1 * jax.random.normal(kg, (hidden_size,), dtype=jnp.float32)
    beta = 0.1 * jax.random.normal(kb, (hidden_size,), dtype=jnp.float32)

    lim2 = 1.0 / (hidden_size ** 0.5)
    w2 = jax.random.uniform(kw2, (hidden_size, projection_size),
                            minval=-lim2, maxval=lim2, dtype=jnp.float32)
    b2 = jax.random.uniform(kb2, (projection_size,),
                            minval=-lim2, maxval=lim2, dtype=jnp.float32)

    # Hoisted once (as it would be per train step only when params change).
    params = prepare_params(w1, b1, gamma, beta, w2, b2)

    out = mlp_forward_prepared(x, params)
    out = jax.block_until_ready(out)

    ref = reference_forward(x, w1, b1, gamma, beta, w2, b2)
    assert out.shape == (batch, projection_size)
    assert out.dtype == x.dtype
    assert jnp.allclose(out, ref, atol=1e-3, rtol=1e-3), "mismatch vs reference"

    print("KERNEL_OK")
</pallas_src>

<mosaic_0001>
module attributes {stable_mosaic.version = 11 : i64} {
  func.func @kernel(%arg0: i32, %arg1: memref<8x128xbf16, #tpu.memory_space<any>>, %arg2: memref<128x128xbf16, #tpu.memory_space<vmem>>, %arg3: memref<1x128xf32, #tpu.memory_space<vmem>>, %arg4: memref<1x128xf32, #tpu.memory_space<vmem>>, %arg5: memref<128x128xbf16, #tpu.memory_space<vmem>>, %arg6: memref<1x128xf32, #tpu.memory_space<vmem>>, %arg7: memref<8x128xf32, #tpu.memory_space<vmem>>, %arg8: memref<8x128xbf16, #tpu.memory_space<vmem>>, %arg9: memref<!tpu.dma_semaphore, #tpu.memory_space<semaphore_mem>>, %arg10: memref<8x128xf32, #tpu.memory_space<vmem>>) attributes {dimension_semantics = [#tpu.dimension_semantics<arbitrary>], iteration_bounds = array<i64: 1>, scalar_prefetch = 0 : i64, scratch_operands = 3 : i64, tpu.core_type = #tpu.core_type<tc>, window_params = [{}, {transform_indices = @transform_1, window_bounds = array<i64: 128, 128>}, {transform_indices = @transform_2, window_bounds = array<i64: 1, 128>}, {transform_indices = @transform_3, window_bounds = array<i64: 1, 128>}, {transform_indices = @transform_4, window_bounds = array<i64: 128, 128>}, {pipeline_mode = #tpu.pipeline_mode<synchronous>, transform_indices = @transform_5, window_bounds = array<i64: 1, 128>}, {pipeline_mode = #tpu.pipeline_mode<synchronous>, transform_indices = @transform_6, window_bounds = array<i64: 8, 128>}]} {
    %c0_i32 = arith.constant 0 : i32
    %0 = arith.cmpi eq, %arg0, %c0_i32 : i32
    %1 = arith.extui %0 : i1 to i32
    %c0_i32_0 = arith.constant 0 : i32
    %2 = arith.cmpi ne, %1, %c0_i32_0 : i32
    scf.if %2 {
      tpu.enqueue_dma source(%arg1 : memref<8x128xbf16, #tpu.memory_space<any>>) target(%arg8 : memref<8x128xbf16, #tpu.memory_space<vmem>>) target_semaphore(%arg9 : memref<!tpu.dma_semaphore, #tpu.memory_space<semaphore_mem>>)
      tpu.wait_dma2 semaphore(%arg9 : memref<!tpu.dma_semaphore, #tpu.memory_space<semaphore_mem>>) src(%arg1 : memref<8x128xbf16, #tpu.memory_space<any>>) dst(%arg8 : memref<8x128xbf16, #tpu.memory_space<vmem>>)
      %cst_23 = arith.constant 0.000000e+00 : f32
      %40 = vector.broadcast %cst_23 : f32 to vector<8x128xf32>
      %c0_24 = arith.constant 0 : index
      %c0_25 = arith.constant 0 : index
      %41 = vector.load %arg10[%c0_24, %c0_25] : memref<8x128xf32, #tpu.memory_space<vmem>>, vector<8x128xf32>
      tpu.vector_store %arg10[%c0_24, %c0_25], %40 {strides = array<i32>} : memref<8x128xf32, #tpu.memory_space<vmem>>, vector<8x128xf32>,
    } else {
    }
    %c0 = arith.constant 0 : index
    %c0_1 = arith.constant 0 : index
    %3 = vector.load %arg8[%c0, %c0_1] : memref<8x128xbf16, #tpu.memory_space<vmem>>, vector<8x128xbf16>
    %c0_2 = arith.constant 0 : index
    %c0_3 = arith.constant 0 : index
    %4 = vector.load %arg2[%c0_2, %c0_3] : memref<128x128xbf16, #tpu.memory_space<vmem>>, vector<128x128xbf16>
    %cst = arith.constant dense<0.000000e+00> : vector<8x128xf32>
    %5 = tpu.matmul %3, %4, %cst {dimension_numbers = #tpu.dot_dimension_numbers<[1], [0], [0], [1], [0, 0, 1, 1], [], []>} : vector<8x128xbf16>, vector<128x128xbf16>, vector<8x128xf32> -> vector<8x128xf32>
    %cst_4 = arith.constant dense<0.000000e+00> : vector<128xf32>
    %6 = vector.multi_reduction <add>, %5, %cst_4 [0] : vector<8x128xf32> to vector<128xf32>
    %7 = vector.shape_cast %6 : vector<128xf32> to vector<1x128xf32>
    %cst_5 = arith.constant 1.250000e-01 : f32
    %8 = vector.broadcast %cst_5 : f32 to vector<1x128xf32>
    %9 = arith.mulf %7, %8 : vector<1x128xf32>
    %10 = vector.broadcast %9 : vector<1x128xf32> to vector<8x128xf32>
    %11 = arith.subf %5, %10 : vector<8x128xf32>
    %12 = arith.mulf %11, %11 : vector<8x128xf32>
    %cst_6 = arith.constant dense<0.000000e+00> : vector<128xf32>
    %13 = vector.multi_reduction <add>, %12, %cst_6 [0] : vector<8x128xf32> to vector<128xf32>
    %14 = vector.shape_cast %13 : vector<128xf32> to vector<1x128xf32>
    %cst_7 = arith.constant 1.250000e-01 : f32
    %15 = vector.broadcast %cst_7 : f32 to vector<1x128xf32>
    %16 = arith.mulf %14, %15 : vector<1x128xf32>
    %c0_8 = arith.constant 0 : index
    %c0_9 = arith.constant 0 : index
    %17 = vector.load %arg3[%c0_8, %c0_9] : memref<1x128xf32, #tpu.memory_space<vmem>>, vector<1x128xf32>
    %cst_10 = arith.constant 9.99999974E-6 : f32
    %18 = vector.broadcast %cst_10 : f32 to vector<1x128xf32>
    %19 = arith.addf %16, %18 : vector<1x128xf32>
    %20 = math.rsqrt %19 : vector<1x128xf32>
    %21 = arith.mulf %17, %20 : vector<1x128xf32>
    %c0_11 = arith.constant 0 : index
    %c0_12 = arith.constant 0 : index
    %22 = vector.load %arg4[%c0_11, %c0_12] : memref<1x128xf32, #tpu.memory_space<vmem>>, vector<1x128xf32>
    %23 = arith.mulf %9, %21 : vector<1x128xf32>
    %24 = arith.subf %22, %23 : vector<1x128xf32>
    %25 = vector.broadcast %21 : vector<1x128xf32> to vector<8x128xf32>
    %26 = arith.mulf %5, %25 : vector<8x128xf32>
    %27 = vector.broadcast %24 : vector<1x128xf32> to vector<8x128xf32>
    %28 = arith.addf %26, %27 : vector<8x128xf32>
    %cst_13 = arith.constant 0.000000e+00 : f32
    %29 = vector.broadcast %cst_13 : f32 to vector<8x128xf32>
    %30 = arith.maximumf %28, %29 : vector<8x128xf32>
    %c0_14 = arith.constant 0 : index
    %c0_15 = arith.constant 0 : index
    %31 = vector.load %arg10[%c0_14, %c0_15] : memref<8x128xf32, #tpu.memory_space<vmem>>, vector<8x128xf32>
    %32 = arith.truncf %30 : vector<8x128xf32> to vector<8x128xbf16>
    %c0_16 = arith.constant 0 : index
    %c0_17 = arith.constant 0 : index
    %33 = vector.load %arg5[%c0_16, %c0_17] : memref<128x128xbf16, #tpu.memory_space<vmem>>, vector<128x128xbf16>
    %cst_18 = arith.constant dense<0.000000e+00> : vector<8x128xf32>
    %34 = tpu.matmul %32, %33, %cst_18 {dimension_numbers = #tpu.dot_dimension_numbers<[1], [0], [0], [1], [0, 0, 1, 1], [], []>} : vector<8x128xbf16>, vector<128x128xbf16>, vector<8x128xf32> -> vector<8x128xf32>
    %35 = arith.addf %31, %34 : vector<8x128xf32>
    %c0_19 = arith.constant 0 : index
    %c0_20 = arith.constant 0 : index
    %36 = vector.load %arg10[%c0_19, %c0_20] : memref<8x128xf32, #tpu.memory_space<vmem>>, vector<8x128xf32>
    tpu.vector_store %arg10[%c0_19, %c0_20], %35 {strides = array<i32>} : memref<8x128xf32, #tpu.memory_space<vmem>>, vector<8x128xf32>,
    %c0_i32_21 = arith.constant 0 : i32
    %37 = arith.cmpi eq, %arg0, %c0_i32_21 : i32
    %38 = arith.extui %37 : i1 to i32
    %c0_i32_22 = arith.constant 0 : i32
    %39 = arith.cmpi ne, %38, %c0_i32_22 : i32
    scf.if %39 {
      %c0_23 = arith.constant 0 : index
      %c0_24 = arith.constant 0 : index
      %40 = vector.load %arg10[%c0_23, %c0_24] : memref<8x128xf32, #tpu.memory_space<vmem>>, vector<8x128xf32>
      %c0_25 = arith.constant 0 : index
      %c0_26 = arith.constant 0 : index
      %41 = vector.load %arg6[%c0_25, %c0_26] : memref<1x128xf32, #tpu.memory_space<vmem>>, vector<1x128xf32>
      %42 = vector.broadcast %41 : vector<1x128xf32> to vector<8x128xf32>
      %43 = arith.addf %40, %42 : vector<8x128xf32>
      %c0_27 = arith.constant 0 : index
      %c0_28 = arith.constant 0 : index
      %44 = vector.load %arg7[%c0_27, %c0_28] : memref<8x128xf32, #tpu.memory_space<vmem>>, vector<8x128xf32>
      tpu.vector_store %arg7[%c0_27, %c0_28], %43 {strides = array<i32>} : memref<8x128xf32, #tpu.memory_space<vmem>>, vector<8x128xf32>,
    } else {
    }
    return
  }
  func.func @transform_1(%arg0: i32) -> (i32, i32) {
    %c0_i32 = arith.constant 0 : i32
    %c0_i32_0 = arith.constant 0 : i32
    return %c0_i32, %arg0 : i32, i32
  }
  func.func @transform_2(%arg0: i32) -> (i32, i32) {
    %c0_i32 = arith.constant 0 : i32
    %c0_i32_0 = arith.constant 0 : i32
    return %c0_i32, %arg0 : i32, i32
  }
  func.func @transform_3(%arg0: i32) -> (i32, i32) {
    %c0_i32 = arith.constant 0 : i32
    %c0_i32_0 = arith.constant 0 : i32
    return %c0_i32, %arg0 : i32, i32
  }
  func.func @transform_4(%arg0: i32) -> (i32, i32) {
    %c0_i32 = arith.constant 0 : i32
    %c0_i32_0 = arith.constant 0 : i32
    return %arg0, %c0_i32 : i32, i32
  }
  func.func @transform_5(%arg0: i32) -> (i32, i32) {
    %c0_i32 = arith.constant 0 : i32
    %c0_i32_0 = arith.constant 0 : i32
    %c0_i32_1 = arith.constant 0 : i32
    return %c0_i32, %c0_i32_0 : i32, i32
  }
  func.func @transform_6(%arg0: i32) -> (i32, i32) {
    %c0_i32 = arith.constant 0 : i32
    %c0_i32_0 = arith.constant 0 : i32
    %c0_i32_1 = arith.constant 0 : i32
    return %c0_i32, %c0_i32_0 : i32, i32
  }
}

</mosaic_0001>

<llo_original>
// kernel: tpu_custom_call.1
$region0: #{tpu_custom_call.1}
  #allocation0 [shape = 'u32[]', space=smem, size = 0x4, offset = 0x4, fixed_abs, tag = 'smem constant byte address 0x4 - core index']
  #allocation1 [shape = 'u32[144,128]{1,0:T(1,128)}', space=vmem, size = 0x12000, scoped, tag = 'internal scratch']
  #allocation2 [shape = 'bf16[8,128]{1,0:T(8,128)(2,1)}', space=vmem, size = 0x800, scoped, tag = 'scratch operand']
  #allocation3 [shape = 's32[1]{0}', space=sflag, size = 0x4, scoped, tag = 'scratch operand']
  #allocation4 [shape = 'f32[8,128]{1,0:T(8,128)}', space=vmem, size = 0x1000, scoped, tag = 'scratch operand']
  #allocation11 [shape = 's32[]', space=sflag, size = 0x4, offset = 0, fixed_abs, tag = 'sflag constant byte address 0x0 - dummy sync flag']
  #allocation12 [shape = 's32[]', space=sflag, size = 0x4, offset = 0, fixed_abs, tag = 'sflag constant byte address 0x0 - dummy sync flag']
  #allocation13 [shape = 'u32[]', space=smem, size = 0x4, offset = 0x44, fixed_abs, tag = 'smem constant byte address 0x44 - assertion arg 0']
  #allocation14 [shape = 'u32[]', space=smem, size = 0x4, offset = 0x48, fixed_abs, tag = 'smem constant byte address 0x48 - assertion arg 1']
  %s0 = inlined_call_operand.hbm [shape: bf16[8,128], index: 0, kind: input, shape index: {}]
  %s1 = inlined_call_operand.hbm [shape: bf16[128,128], index: 1, kind: input, shape index: {}]
  %s2 = inlined_call_operand.vmem [shape: f32[1,128], index: 2, kind: input, shape index: {}]
  %s3 = inlined_call_operand.vmem [shape: f32[1,128], index: 3, kind: input, shape index: {}]
  %s4 = inlined_call_operand.hbm [shape: bf16[128,128], index: 4, kind: input, shape index: {}]
  %s5 = inlined_call_operand.vmem [shape: f32[1,128], index: 5, kind: input, shape index: {}]
  %s6 = inlined_call_operand.hbm [shape: f32[8,128], index: 6, kind: output, shape index: {}]
  %s7 = sld [smem:[#allocation0]]
  $region50: #{tpu_custom_call.1} parent=0
    _
  %s9 = ssub.s32 1, %s7
  %s10 = scalar_select 0, %s9, %s7
  $region1: #{tpu_custom_call.1} parent=0
    #allocation5 [shape = 'u8[32768]{0}', space=vmem, size = 0x8000, scoped, tag = 'input window, operand 1, single buffered']
    #allocation6 [shape = 's32[1]{0}', space=sflag, size = 0x4, scoped, tag = 'scoped memory for tpu_custom_call.1']
    #allocation7 [shape = 's32[1]{0}', space=sflag, size = 0x4, scoped, tag = 'scoped memory for tpu_custom_call.1']
    #allocation8 [shape = 'u8[32768]{0}', space=vmem, size = 0x8000, scoped, tag = 'input window, operand 4, single buffered']
    #allocation9 [shape = 's32[1]{0}', space=sflag, size = 0x4, scoped, tag = 'scoped memory for tpu_custom_call.1']
    #allocation10 [shape = 'u8[4096]{0}', space=vmem, size = 0x1000, scoped, tag = 'output window, operand 0, single buffered']
    %11 = vsyncpa [#allocation6], 0
    %12 = vsyncpa [#allocation9], 0
    %13 = vsyncpa [#allocation7], 0
    // Predicated region
    $region2: #{tpu_custom_call.1} parent=1 // pred_check
      _
    $region3: #{tpu_custom_call.1} parent=1 // pred_check_branch
      %15 = sbr.rel (0) target = $region5
    $region4: #{tpu_custom_call.1} parent=1 // pred_region
      %s17 = ssub.s32 1024, 1024
      %18 = vsyncadd [#allocation6], %s17
      %s19 = sshll.u32 [#allocation5], 4
      %s20 = int_to_ptr.vmem [resolvable:$true] %s19
      %25 = dma.hbm_to_vmem [thread:$0]  %s1, 1024, %s20, [#allocation6], 64, 64, 4
    $region5: #{tpu_custom_call.1} parent=1 // pred_fallthru
      _
    // Predicated region
    $region6: #{tpu_custom_call.1} parent=1 // pred_check
      _
    $region7: #{tpu_custom_call.1} parent=1 // pred_check_branch
      %27 = sbr.rel (0) target = $region9
    $region8: #{tpu_custom_call.1} parent=1 // pred_region
      _
    $region9: #{tpu_custom_call.1} parent=1 // pred_fallthru
      _
    // Predicated region
    $region10: #{tpu_custom_call.1} parent=1 // pred_check
      _
    $region11: #{tpu_custom_call.1} parent=1 // pred_check_branch
      %29 = sbr.rel (0) target = $region13
    $region12: #{tpu_custom_call.1} parent=1 // pred_region
      _
    $region13: #{tpu_custom_call.1} parent=1 // pred_fallthru
      _
    // Predicated region
    $region14: #{tpu_custom_call.1} parent=1 // pred_check
      _
    $region15: #{tpu_custom_call.1} parent=1 // pred_check_branch
      %31 = sbr.rel (0) target = $region17
    $region16: #{tpu_custom_call.1} parent=1 // pred_region
      %s33 = ssub.s32 1024, 1024
      %34 = vsyncadd [#allocation9], %s33
      %s35 = sshll.u32 [#allocation8], 4
      %s36 = int_to_ptr.vmem [resolvable:$true] %s35
      %41 = dma.hbm_to_vmem [thread:$0]  %s4, 1024, %s36, [#allocation9], 64, 64, 4
    $region17: #{tpu_custom_call.1} parent=1 // pred_fallthru
      _
    // Predicated region
    $region18: #{tpu_custom_call.1} parent=1 // pred_check
      _
    $region19: #{tpu_custom_call.1} parent=1 // pred_check_branch
      %43 = sbr.rel (0) target = $region21
    $region20: #{tpu_custom_call.1} parent=1 // pred_region
      _
    $region21: #{tpu_custom_call.1} parent=1 // pred_fallthru
      _
    // Predicated region
    $region22: #{tpu_custom_call.1} parent=1 // pred_check
      _
    $region23: #{tpu_custom_call.1} parent=1 // pred_check_branch
      %45 = sbr.rel (0) target = $region25
    $region24: #{tpu_custom_call.1} parent=1 // pred_region
      %46 = dma.done [#allocation6], 1024
    $region25: #{tpu_custom_call.1} parent=1 // pred_fallthru
      _
    // Predicated region
    $region26: #{tpu_custom_call.1} parent=1 // pred_check
      _
    $region27: #{tpu_custom_call.1} parent=1 // pred_check_branch
      %48 = sbr.rel (0) target = $region29
    $region28: #{tpu_custom_call.1} parent=1 // pred_region
      %49 = dma.done [#allocation9], 1024
    $region29: #{tpu_custom_call.1} parent=1 // pred_fallthru
      _
    %p51 = scmp.eq.s32.totalorder 0, 0
    // Predicated region
    $region30: #{tpu_custom_call.1} parent=1 // pred_check
      %p52 = pneg %p51
    $region31: #{tpu_custom_call.1} parent=1 // pred_check_branch
      %54 = sbr.rel (%p52) target = $region33
    $region32: #{tpu_custom_call.1} parent=1 // pred_region
      // Predicated region
      $region34: #{tpu_custom_call.1} parent=32 // pred_check
        _
      $region35: #{tpu_custom_call.1} parent=32 // pred_check_branch
        %56 = sbr.rel target = $region37
      $region36: #{tpu_custom_call.1} parent=32 // pred_region
        %57 = sst [smem:[#allocation13]] [#allocation12]
        %58 = sst [smem:[#allocation14]] [#allocation11]
      $region37: #{tpu_custom_call.1} parent=32 // pred_fallthru
        _
      %60 = shalt.err (0)
      %s62 = sshll.u32 [#allocation2], 4
      %s63 = int_to_ptr.vmem [resolvable:$true] %s62
      %65 = dma.hbm_to_vmem [thread:$0]  %s0, 64, %s63, [#allocation3]
      %s66 = smul.u32 4, 1
      %s67 = smul.u32 %s66, 1
      %s68 = sshll.u32 %s67, 4
      %69 = dma.done [#allocation3], %s68
      %70 = vst [vmem:[#allocation4] sm:$0xff] 0.0
    $region33: #{tpu_custom_call.1} parent=1 // pred_fallthru
      _
    %v71 = vld [vmem:[#allocation2] sm:$0xf]
    %v72 = vld [vmem:[#allocation5] sm:$0xf]
    %v73 = vld [vmem:[#allocation5 + $0x4] sm:$0xf]
    %v74 = vld [vmem:[#allocation5 + $0x8] sm:$0xf]
    %v75 = vld [vmem:[#allocation5 + $0xc] sm:$0xf]
    %v76 = vld [vmem:[#allocation5 + $0x10] sm:$0xf]
    %v77 = vld [vmem:[#allocation5 + $0x14] sm:$0xf]
    %v78 = vld [vmem:[#allocation5 + $0x18] sm:$0xf]
    %v79 = vld [vmem:[#allocation5 + $0x1c] sm:$0xf]
    %v80 = vld [vmem:[#allocation5 + $0x20] sm:$0xf]
    %v81 = vld [vmem:[#allocation5 + $0x24] sm:$0xf]
    %v82 = vld [vmem:[#allocation5 + $0x28] sm:$0xf]
    %v83 = vld [vmem:[#allocation5 + $0x2c] sm:$0xf]
    %v84 = vld [vmem:[#allocation5 + $0x30] sm:$0xf]
    %v85 = vld [vmem:[#allocation5 + $0x34] sm:$0xf]
    %v86 = vld [vmem:[#allocation5 + $0x38] sm:$0xf]
    %v87 = vld [vmem:[#allocation5 + $0x3c] sm:$0xf]
    %v104 = vunpack.c.l.b16 %v72
    %v105 = vunpack.c.l.b16 %v73
    %v106 = vunpack.c.l.b16 %v74
    %v107 = vunpack.c.l.b16 %v75
    %v108 = vunpack.c.l.b16 %v76
    %v109 = vunpack.c.l.b16 %v77
    %v110 = vunpack.c.l.b16 %v78
    %v111 = vunpack.c.l.b16 %v79
    %v112 = vunpack.c.l.b16 %v80
    %v113 = vunpack.c.l.b16 %v81
    %v114 = vunpack.c.l.b16 %v82
    %v115 = vunpack.c.l.b16 %v83
    %v116 = vunpack.c.l.b16 %v84
    %v117 = vunpack.c.l.b16 %v85
    %v118 = vunpack.c.l.b16 %v86
    %v119 = vunpack.c.l.b16 %v87
    %v120 = vpack.c.b16 %v105, %v104
    %v121 = vpack.c.b16 %v107, %v106
    %v122 = vpack.c.b16 %v109, %v108
    %v123 = vpack.c.b16 %v111, %v110
    %v124 = vpack.c.b16 %v113, %v112
    %v125 = vpack.c.b16 %v115, %v114
    %v126 = vpack.c.b16 %v117, %v116
    %v127 = vpack.c.b16 %v119, %v118
    %136 = vmatprep.subr.bf16.mxu0 0
    %137 = vmatpush1.bf16.msra.mxu0 %v127
    %138 = vmatprep.subr.bf16.mxu0 0
    %139 = vmatpush1.bf16.msra.mxu0 %v126
    %140 = vmatprep.subr.bf16.mxu0 0
    %141 = vmatpush1.bf16.msra.mxu0 %v125
    %142 = vmatprep.subr.bf16.mxu0 0
    %143 = vmatpush1.bf16.msra.mxu0 %v124
    %144 = vmatprep.subr.bf16.mxu0 0
    %145 = vmatpush1.bf16.msra.mxu0 %v123
    %146 = vmatprep.subr.bf16.mxu0 0
    %147 = vmatpush1.bf16.msra.mxu0 %v122
    %148 = vmatprep.subr.bf16.mxu0 0
    %149 = vmatpush1.bf16.msra.mxu0 %v121
    %150 = vmatprep.subr.bf16.mxu0 0
    %151 = vmatpush1.bf16.msra.mxu0 %v120
    %152 = vmatprep.subr.bf16.mxu0 0
    %153 = vmatpush2.bf16.msra.mxu0 0
    %154 = vmatprep.subr.bf16.mxu0 0
    %155 = vmatpush2.bf16.msra.mxu0 0
    %156 = vmatprep.subr.bf16.mxu0 0
    %157 = vmatpush2.bf16.msra.mxu0 0
    %158 = vmatprep.subr.bf16.mxu0 0
    %159 = vmatpush2.bf16.msra.mxu0 0
    %160 = vmatprep.subr.bf16.mxu0 0
    %161 = vmatpush2.bf16.msra.mxu0 0
    %162 = vmatprep.subr.bf16.mxu0 0
    %163 = vmatpush2.bf16.msra.mxu0 0
    %164 = vmatprep.subr.bf16.mxu0 0
    %165 = vmatpush2.bf16.msra.mxu0 0
    %166 = vmatprep.subr.bf16.mxu0 0
    %167 = vmatpush2.bf16.msra.mxu0 0
    %168 = vmatprep.mubr.bf16.mxu0 0
    %169 = vmatmul.mubr.bf16.gmra.mxu0 %v71
    %v170 = vpop.f32.mrf.mxu0
    %v171 = vadd.f32 0.0, %v170
    %v172 = vpop.f32.mrf.mxu0
    %v173 = vpop.f32.mrf.mxu0
    %v174 = vpop.f32.mrf.mxu0
    %175 = vdwg.mxu0
    %v176 = vrot.slane %v171, 4
    %v177 = vadd.f32 %v171, %v176
    %v178 = vrot.slane %v177, 2
    %v179 = vadd.f32 %v177, %v178
    %v180 = vrot.slane %v179, 1
    %v181 = vadd.f32 %v179, %v180
    %v182 = vmul.f32 %v181, 0.125
    %v183 = vsub.f32 %v171, %v182
    %v184 = vmul.f32 %v183, %v183
    %v185 = vrot.slane %v184, 4
    %v186 = vadd.f32 %v184, %v185
    %v187 = vrot.slane %v186, 2
    %v188 = vadd.f32 %v186, %v187
    %v189 = vrot.slane %v188, 1
    %v190 = vadd.f32 %v188, %v189
    %v191 = vmul.f32 %v190, 0.125
    %v192 = vld [vmem:[%s2] sm:$0x1]
    %v193 = vadd.f32 %v191, 1e-05
    %v194 = vrsqrt.pop %v193
    %v195 = vmul.f32 %v192, %v194
    %v196 = vld [vmem:[%s3] sm:$0x1]
    %v197 = vmul.f32 %v182, %v195
    %v198 = vsub.f32 %v196, %v197
    %v200 = vlaneseq
    %v201 = vshrl.u32 %v200, 7
    %v202 = vsub.s32 0, %v201
    %v203 = vrot.slane %v195, %v202
    %v205 = vmul.f32 %v171, %v203
    %v207 = vlaneseq
    %v208 = vshrl.u32 %v207, 7
    %v209 = vsub.s32 0, %v208
    %v210 = vrot.slane %v198, %v209
    %v212 = vadd.f32 %v205, %v210
    %v213 = vmax.f32 %v212, 0.0
    %v214 = vld [vmem:[#allocation4] sm:$0xff]
    %v215 = vpack.c.bf16 %v213, %v213
    %v216 = vld [vmem:[#allocation8] sm:$0xf]
    %v217 = vld [vmem:[#allocation8 + $0x4] sm:$0xf]
    %v218 = vld [vmem:[#allocation8 + $0x8] sm:$0xf]
    %v219 = vld [vmem:[#allocation8 + $0xc] sm:$0xf]
    %v220 = vld [vmem:[#allocation8 + $0x10] sm:$0xf]
    %v221 = vld [vmem:[#allocation8 + $0x14] sm:$0xf]
    %v222 = vld [vmem:[#allocation8 + $0x18] sm:$0xf]
    %v223 = vld [vmem:[#allocation8 + $0x1c] sm:$0xf]
    %v224 = vld [vmem:[#allocation8 + $0x20] sm:$0xf]
    %v225 = vld [vmem:[#allocation8 + $0x24] sm:$0xf]
    %v226 = vld [vmem:[#allocation8 + $0x28] sm:$0xf]
    %v227 = vld [vmem:[#allocation8 + $0x2c] sm:$0xf]
    %v228 = vld [vmem:[#allocation8 + $0x30] sm:$0xf]
    %v229 = vld [vmem:[#allocation8 + $0x34] sm:$0xf]
    %v230 = vld [vmem:[#allocation8 + $0x38] sm:$0xf]
    %v231 = vld [vmem:[#allocation8 + $0x3c] sm:$0xf]
    %v248 = vunpack.c.l.b16 %v216
    %v249 = vunpack.c.l.b16 %v217
    %v250 = vunpack.c.l.b16 %v218
    %v251 = vunpack.c.l.b16 %v219
    %v252 = vunpack.c.l.b16 %v220
    %v253 = vunpack.c.l.b16 %v221
    %v254 = vunpack.c.l.b16 %v222
    %v255 = vunpack.c.l.b16 %v223
    %v256 = vunpack.c.l.b16 %v224
    %v257 = vunpack.c.l.b16 %v225
    %v258 = vunpack.c.l.b16 %v226
    %v259 = vunpack.c.l.b16 %v227
    %v260 = vunpack.c.l.b16 %v228
    %v261 = vunpack.c.l.b16 %v229
    %v262 = vunpack.c.l.b16 %v230
    %v263 = vunpack.c.l.b16 %v231
    %v264 = vpack.c.b16 %v249, %v248
    %v265 = vpack.c.b16 %v251, %v250
    %v266 = vpack.c.b16 %v253, %v252
    %v267 = vpack.c.b16 %v255, %v254
    %v268 = vpack.c.b16 %v257, %v256
    %v269 = vpack.c.b16 %v259, %v258
    %v270 = vpack.c.b16 %v261, %v260
    %v271 = vpack.c.b16 %v263, %v262
    %280 = vmatprep.subr.bf16.mxu0 0
    %281 = vmatpush1.bf16.msra.mxu0 %v271
    %282 = vmatprep.subr.bf16.mxu0 0
    %283 = vmatpush1.bf16.msra.mxu0 %v270
    %284 = vmatprep.subr.bf16.mxu0 0
    %285 = vmatpush1.bf16.msra.mxu0 %v269
    %286 = vmatprep.subr.bf16.mxu0 0
    %287 = vmatpush1.bf16.msra.mxu0 %v268
    %288 = vmatprep.subr.bf16.mxu0 0
    %289 = vmatpush1.bf16.msra.mxu0 %v267
    %290 = vmatprep.subr.bf16.mxu0 0
    %291 = vmatpush1.bf16.msra.mxu0 %v266
    %292 = vmatprep.subr.bf16.mxu0 0
    %293 = vmatpush1.bf16.msra.mxu0 %v265
    %294 = vmatprep.subr.bf16.mxu0 0
    %295 = vmatpush1.bf16.msra.mxu0 %v264
    %296 = vmatprep.subr.bf16.mxu0 0
    %297 = vmatpush2.bf16.msra.mxu0 0
    %298 = vmatprep.subr.bf16.mxu0 0
    %299 = vmatpush2.bf16.msra.mxu0 0
    %300 = vmatprep.subr.bf16.mxu0 0
    %301 = vmatpush2.bf16.msra.mxu0 0
    %302 = vmatprep.subr.bf16.mxu0 0
    %303 = vmatpush2.bf16.msra.mxu0 0
    %304 = vmatprep.subr.bf16.mxu0 0
    %305 = vmatpush2.bf16.msra.mxu0 0
    %306 = vmatprep.subr.bf16.mxu0 0
    %307 = vmatpush2.bf16.msra.mxu0 0
    %308 = vmatprep.subr.bf16.mxu0 0
    %309 = vmatpush2.bf16.msra.mxu0 0
    %310 = vmatprep.subr.bf16.mxu0 0
    %311 = vmatpush2.bf16.msra.mxu0 0
    %312 = vmatprep.mubr.bf16.mxu0 0
    %313 = vmatmul.mubr.bf16.gmra.mxu0 %v215
    %v314 = vpop.f32.mrf.mxu0
    %v315 = vadd.f32 0.0, %v314
    %v316 = vpop.f32.mrf.mxu0
    %v317 = vpop.f32.mrf.mxu0
    %v318 = vpop.f32.mrf.mxu0
    %319 = vdwg.mxu0
    %v320 = vadd.f32 %v214, %v315
    %321 = vst [vmem:[#allocation4] sm:$0xff] %v320
    // Predicated region
    $region38: #{tpu_custom_call.1} parent=1 // pred_check
      %p322 = pneg %p51
    $region39: #{tpu_custom_call.1} parent=1 // pred_check_branch
      %324 = sbr.rel (%p322) target = $region41
    $region40: #{tpu_custom_call.1} parent=1 // pred_region
      %v325 = vld [vmem:[#allocation4] sm:$0xff]
      %v326 = vld [vmem:[%s5] sm:$0x1]
      %v328 = vlaneseq
      %v329 = vshrl.u32 %v328, 7
      %v330 = vsub.s32 0, %v329
      %v331 = vrot.slane %v326, %v330
      %v333 = vadd.f32 %v325, %v331
      %334 = vst [vmem:[#allocation10] sm:$0xff] %v333
    $region41: #{tpu_custom_call.1} parent=1 // pred_fallthru
      _
    // Predicated region
    $region42: #{tpu_custom_call.1} parent=1 // pred_check
      _
    $region43: #{tpu_custom_call.1} parent=1 // pred_check_branch
      %336 = sbr.rel (0) target = $region45
    $region44: #{tpu_custom_call.1} parent=1 // pred_region
      %s338 = ssub.s32 128, 128
      %339 = vsyncadd [#allocation7], %s338
      %s341 = sshll.u32 [#allocation10], 4
      %s342 = int_to_ptr.vmem [resolvable:$true] %s341
      %344 = dma.vmem_to_hbm [thread:$0]  %s342, 128, %s6, [#allocation7]
    $region45: #{tpu_custom_call.1} parent=1 // pred_fallthru
      _
    // Predicated region
    $region46: #{tpu_custom_call.1} parent=1 // pred_check
      _
    $region47: #{tpu_custom_call.1} parent=1 // pred_check_branch
      %346 = sbr.rel (0) target = $region49
    $region48: #{tpu_custom_call.1} parent=1 // pred_region
      %347 = dma.done [#allocation7], 128
    $region49: #{tpu_custom_call.1} parent=1 // pred_fallthru
      _
    %348 = vsyncpa [#allocation6], 1
    %349 = vsyncpa [#allocation9], 1
    %350 = vsyncpa [#allocation7], 1
  %351 = vsyncmov [#allocation3]
  %s352 = vpop.sfrf %351
  %p353 = scmp.eq.s32.totalorder %s352, 0
  %p354 = pneg %p353
  %356 = shalt.err (%p354)

</llo_original>
